<compile_context>
chip_gen: v7x
topology: tpu7x:2x2x1
jax: 0.10.0
libtpu: 0.0.40
codegen_flags: <defaults>
</compile_context>

<pallas_src>
import functools

import jax
import jax.numpy as jnp
from jax.experimental import pallas as pl
from jax.experimental.pallas import tpu as pltpu


def _hsigmoid_kernel(x_ref, o_ref, *, bias, divisor, min_value, max_value):
    x = x_ref[...]
    # True division for exact parity with the mmcv definition (mem-bound op,
    # the extra cost is hidden under the DMA anyway).
    y = (x + bias) / divisor
    o_ref[...] = jnp.clip(y, min_value, max_value).astype(o_ref.dtype)


def hsigmoid(x, bias=3.0, divisor=6.0, min_value=0.0, max_value=1.0,
             *, tile_rows=1024):
    """Elementwise hard-sigmoid. Output shape/dtype match the input."""
    assert divisor != 0
    orig_shape = x.shape
    orig_dtype = x.dtype
    n = x.size
    if n == 0:
        return x

    # Sublane multiple depends on dtype packing: 8 for 4-byte, 16 for 2-byte,
    # 32 for 1-byte dtypes.
    itemsize = jnp.dtype(orig_dtype).itemsize
    sub = max(8, 32 // itemsize)

    # Pick the widest lane-dense last dim (multiple of 128) that still leaves
    # at least one full sublane group of rows. Wider last dim => fewer, larger
    # contiguous vector stores per tile.
    lane = 128
    for cand in (1024, 512, 256):
        if pl.cdiv(n, cand) >= sub:
            lane = cand
            break

    rows = pl.cdiv(n, lane)

    # Keep block bytes roughly constant (~tile_rows x 128 elements) regardless
    # of the chosen lane width; clamp to the sublane multiple.
    tr = max(sub, ((tile_rows * 128 // lane) // sub) * sub)
    if rows <= tr:
        tr = ((rows + sub - 1) // sub) * sub

    # Pad the row count up to a whole number of tiles (no ragged blocks, no
    # tile-collapsing divisor search). Pad is skipped entirely when the size
    # already fits the slab.
    rows_padded = ((rows + tr - 1) // tr) * tr
    padded_len = rows_padded * lane

    flat = x.reshape(-1)
    if padded_len != n:
        flat = jnp.pad(flat, (0, padded_len - n))
    x2d = flat.reshape(rows_padded, lane)

    kernel = functools.partial(
        _hsigmoid_kernel, bias=bias, divisor=divisor,
        min_value=min_value, max_value=max_value)

    # TODO(synk): if an xprof trace on v7x shows exposed DMA at this block
    # size, switch the BlockSpecs to pipeline_mode=pl.Buffered(3).
    out2d = pl.pallas_call(
        kernel,
        out_shape=jax.ShapeDtypeStruct((rows_padded, lane), orig_dtype),
        grid_spec=pltpu.PrefetchScalarGridSpec(
            num_scalar_prefetch=0,
            grid=(rows_padded // tr,),
            in_specs=[pl.BlockSpec((tr, lane), lambda i: (i, 0))],
            out_specs=pl.BlockSpec((tr, lane), lambda i: (i, 0)),
        ),
        compiler_params=pltpu.CompilerParams(
            dimension_semantics=("parallel",)),
    )(x2d)

    out_flat = out2d.reshape(-1)
    if padded_len != n:
        out_flat = out_flat[:n]
    return out_flat.reshape(orig_shape)


if __name__ == "__main__":
    key = jax.random.PRNGKey(0)
    x = jax.random.normal(key, (2, 4, 16, 16), dtype=jnp.float32) * 4.0

    out = hsigmoid(x)
    out = jax.block_until_ready(out)

    # Reference check in plain JAX.
    ref = jnp.clip((x + 3.0) / 6.0, 0.0, 1.0)
    assert out.shape == x.shape and out.dtype == x.dtype
    assert jnp.max(jnp.abs(out - ref)) < 1e-6

    print("KERNEL_OK")
</pallas_src>

<mosaic_0001>
module attributes {stable_mosaic.version = 11 : i64} {
  func.func @_hsigmoid_kernel(%arg0: i32, %arg1: memref<8x256xf32, #tpu.memory_space<vmem>>, %arg2: memref<8x256xf32, #tpu.memory_space<vmem>>) attributes {dimension_semantics = [#tpu.dimension_semantics<parallel>], iteration_bounds = array<i64: 1>, scalar_prefetch = 0 : i64, scratch_operands = 0 : i64, tpu.core_type = #tpu.core_type<tc>, window_params = [{transform_indices = @transform_0, window_bounds = array<i64: 8, 256>}, {transform_indices = @transform_1, window_bounds = array<i64: 8, 256>}]} {
    %c0 = arith.constant 0 : index
    %c0_0 = arith.constant 0 : index
    %0 = vector.load %arg1[%c0, %c0_0] : memref<8x256xf32, #tpu.memory_space<vmem>>, vector<8x256xf32>
    %cst = arith.constant 3.000000e+00 : f32
    %1 = vector.broadcast %cst : f32 to vector<8x256xf32>
    %2 = arith.addf %0, %1 : vector<8x256xf32>
    %cst_1 = arith.constant 6.000000e+00 : f32
    %3 = vector.broadcast %cst_1 : f32 to vector<8x256xf32>
    %4 = arith.divf %2, %3 : vector<8x256xf32>
    %cst_2 = arith.constant 0.000000e+00 : f32
    %cst_3 = arith.constant 1.000000e+00 : f32
    %5 = vector.broadcast %cst_2 : f32 to vector<8x256xf32>
    %6 = arith.maximumf %5, %4 : vector<8x256xf32>
    %7 = vector.broadcast %cst_3 : f32 to vector<8x256xf32>
    %8 = arith.minimumf %7, %6 : vector<8x256xf32>
    %c0_4 = arith.constant 0 : index
    %c0_5 = arith.constant 0 : index
    %9 = vector.load %arg2[%c0_4, %c0_5] : memref<8x256xf32, #tpu.memory_space<vmem>>, vector<8x256xf32>
    tpu.vector_store %arg2[%c0_4, %c0_5], %8 {strides = array<i32>} : memref<8x256xf32, #tpu.memory_space<vmem>>, vector<8x256xf32>,
    return
  }
  func.func @transform_0(%arg0: i32) -> (i32, i32) {
    %c0_i32 = arith.constant 0 : i32
    %c0_i32_0 = arith.constant 0 : i32
    return %arg0, %c0_i32 : i32, i32
  }
  func.func @transform_1(%arg0: i32) -> (i32, i32) {
    %c0_i32 = arith.constant 0 : i32
    %c0_i32_0 = arith.constant 0 : i32
    return %arg0, %c0_i32 : i32, i32
  }
}

</mosaic_0001>

<llo_original>
// kernel: tpu_custom_call.1
$region0: #{tpu_custom_call.1}
  #allocation0 [shape = 'u32[]', space=smem, size = 0x4, offset = 0x4, fixed_abs, tag = 'smem constant byte address 0x4 - core index']
  #allocation1 [shape = 'u32[144,128]{1,0:T(1,128)}', space=vmem, size = 0x12000, scoped, tag = 'internal scratch']
  %s0 = inlined_call_operand.hbm [shape: f32[8,256], index: 0, kind: input, shape index: {}]
  %s1 = inlined_call_operand.hbm [shape: f32[8,256], index: 1, kind: output, shape index: {}]
  %s2 = sld [smem:[#allocation0]]
  $region18: #{tpu_custom_call.1} parent=0
    _
  %s4 = ssub.s32 1, %s2
  %s5 = scalar_select 0, %s4, %s2
  $region1: #{tpu_custom_call.1} parent=0
    #allocation2 [shape = 'u8[8192]{0}', space=vmem, size = 0x2000, scoped, tag = 'input window, operand 0, single buffered']
    #allocation3 [shape = 's32[1]{0}', space=sflag, size = 0x4, scoped, tag = 'scoped memory for tpu_custom_call.1']
    #allocation4 [shape = 's32[1]{0}', space=sflag, size = 0x4, scoped, tag = 'scoped memory for tpu_custom_call.1']
    #allocation5 [shape = 'u8[8192]{0}', space=vmem, size = 0x2000, scoped, tag = 'output window, operand 0, single buffered']
    %6 = vsyncpa [#allocation3], 0
    %7 = vsyncpa [#allocation4], 0
    // Predicated region
    $region2: #{tpu_custom_call.1} parent=1 // pred_check
      _
    $region3: #{tpu_custom_call.1} parent=1 // pred_check_branch
      %9 = sbr.rel (0) target = $region5
    $region4: #{tpu_custom_call.1} parent=1 // pred_region
      %s11 = ssub.s32 256, 256
      %12 = vsyncadd [#allocation3], %s11
      %s14 = sshll.u32 [#allocation2], 4
      %s15 = int_to_ptr.vmem [resolvable:$true] %s14
      %17 = dma.hbm_to_vmem [thread:$0]  %s0, 256, %s15, [#allocation3]
    $region5: #{tpu_custom_call.1} parent=1 // pred_fallthru
      _
    // Predicated region
    $region6: #{tpu_custom_call.1} parent=1 // pred_check
      _
    $region7: #{tpu_custom_call.1} parent=1 // pred_check_branch
      %19 = sbr.rel (0) target = $region9
    $region8: #{tpu_custom_call.1} parent=1 // pred_region
      %20 = dma.done [#allocation3], 256
    $region9: #{tpu_custom_call.1} parent=1 // pred_fallthru
      _
    %v21 = vld [vmem:[#allocation2] sm:$0xff]
    %v22 = vld [vmem:[#allocation2 + $0x8] sm:$0xff]
    %v23 = vadd.f32 %v21, 3.0
    %v24 = vadd.f32 %v22, 3.0
    %v25 = vrcp.pop 6.0
    %v26 = vmul.f32 %v23, %v25
    %v27 = vmul.f32 %v24, %v25
    %v28 = vmax.f32 %v26, 0.0
    %v29 = vmax.f32 %v27, 0.0
    %v30 = vmin.f32 %v28, 1.0
    %v31 = vmin.f32 %v29, 1.0
    %32 = vst [vmem:[#allocation5] sm:$0xff] %v30
    %33 = vst [vmem:[#allocation5 + $0x8] sm:$0xff] %v31
    // Predicated region
    $region10: #{tpu_custom_call.1} parent=1 // pred_check
      _
    $region11: #{tpu_custom_call.1} parent=1 // pred_check_branch
      %35 = sbr.rel (0) target = $region13
    $region12: #{tpu_custom_call.1} parent=1 // pred_region
      %s37 = ssub.s32 256, 256
      %38 = vsyncadd [#allocation4], %s37
      %s40 = sshll.u32 [#allocation5], 4
      %s41 = int_to_ptr.vmem [resolvable:$true] %s40
      %43 = dma.vmem_to_hbm [thread:$0]  %s41, 256, %s1, [#allocation4]
    $region13: #{tpu_custom_call.1} parent=1 // pred_fallthru
      _
    // Predicated region
    $region14: #{tpu_custom_call.1} parent=1 // pred_check
      _
    $region15: #{tpu_custom_call.1} parent=1 // pred_check_branch
      %45 = sbr.rel (0) target = $region17
    $region16: #{tpu_custom_call.1} parent=1 // pred_region
      %46 = dma.done [#allocation4], 256
    $region17: #{tpu_custom_call.1} parent=1 // pred_fallthru
      _
    %47 = vsyncpa [#allocation3], 1
    %48 = vsyncpa [#allocation4], 1

</llo_original>
